<compile_context>
chip_gen: v6e
topology: v6e:2x2x1
jax: 0.10.0
libtpu: 0.0.40
codegen_flags: <defaults>
</compile_context>

<pallas_src>
import functools

import jax
import jax.numpy as jnp
from jax import lax
from jax.experimental import pallas as pl
from jax.experimental.pallas import tpu as pltpu


# ----------------------------------------------------------------------------
# helpers
# ----------------------------------------------------------------------------
def _round_up(x, m):
    return ((x + m - 1) // m) * m


def _min_row_tile(dtype):
    """Minimum sublane tile: 8 for f32, 16 for bf16, 32 for int8/fp8."""
    return max(8, 32 // jnp.dtype(dtype).itemsize)


def _vmem_capacity_bytes():
    """Physical VMEM per core; conservative fallback if the query fails."""
    try:
        return int(pltpu.get_tpu_info().vmem_capacity_bytes)
    except Exception:  # pragma: no cover - older jax / CPU tracing
        return 64 << 20  # v7x per-TC physical VMEM (smallest of the family)


def _tail(y, bias, gamma, beta, alpha, *, act_name, use_ln, eps, valid_n):
    """Bias + optional (masked) LayerNorm + activation, all in f32."""
    y = y + bias
    n = y.shape[-1]
    if use_ln:
        if valid_n != n:
            # out_size was padded to a lane-dense multiple of 128: compute the
            # LayerNorm statistics only over the first `valid_n` columns.
            col = lax.broadcasted_iota(jnp.int32, y.shape, len(y.shape) - 1)
            mask = col < valid_n
            cnt = jnp.float32(valid_n)
            u = jnp.sum(jnp.where(mask, y, 0.0), axis=-1, keepdims=True) / cnt
            d = jnp.where(mask, y - u, 0.0)
            s = jnp.sum(d * d, axis=-1, keepdims=True) / cnt
        else:
            u = jnp.mean(y, axis=-1, keepdims=True)
            d = y - u
            s = jnp.mean(d * d, axis=-1, keepdims=True)
        y = (y - u) * lax.rsqrt(s + eps)
        y = gamma * y + beta

    if act_name == "relu":
        y = jnp.maximum(y, 0.0)
    elif act_name == "prelu":
        y = jnp.where(y > 0, y, alpha * y)
    elif act_name == "sigmoid":
        # exact sigmoid (exp on the EUP, exact reciprocal) for strict parity.
        y = 1.0 / (1.0 + jnp.exp(-y))
    return y


# ----------------------------------------------------------------------------
# kernels
# ----------------------------------------------------------------------------
def _mlp_wres_kernel(alpha_ref, x_ref, w_ref, b_ref, g_ref, bt_ref, o_ref, *,
                     act_name, use_ln, eps, valid_n):
    """W-resident path: one MXU dot per row tile, fused pointwise tail."""
    y = jnp.dot(x_ref[...], w_ref[...], preferred_element_type=jnp.float32)
    a = alpha_ref[0].astype(jnp.float32)
    y = _tail(y,
              b_ref[...].astype(jnp.float32),
              g_ref[...].astype(jnp.float32),
              bt_ref[...].astype(jnp.float32),
              a, act_name=act_name, use_ln=use_ln, eps=eps, valid_n=valid_n)
    o_ref[...] = y.astype(o_ref.dtype)


def _mlp_ktiled_kernel(alpha_ref, x_ref, w_ref, b_ref, g_ref, bt_ref, o_ref,
                       acc_ref, *, act_name, use_ln, eps, valid_n):
    """Fallback path for very large W: K-reduction with an f32 accumulator."""
    k = pl.program_id(1)

    @pl.when(k == 0)
    def _init():
        acc_ref[...] = jnp.zeros_like(acc_ref)

    acc_ref[...] += jnp.dot(x_ref[...], w_ref[...],
                            preferred_element_type=jnp.float32)

    @pl.when(k == pl.num_programs(1) - 1)
    def _finalize():
        a = alpha_ref[0].astype(jnp.float32)
        y = _tail(acc_ref[...],
                  b_ref[...].astype(jnp.float32),
                  g_ref[...].astype(jnp.float32),
                  bt_ref[...].astype(jnp.float32),
                  a, act_name=act_name, use_ln=use_ln, eps=eps, valid_n=valid_n)
        o_ref[...] = y.astype(o_ref.dtype)


# ----------------------------------------------------------------------------
# wrapper
# ----------------------------------------------------------------------------
@functools.partial(jax.jit,
                   static_argnames=("act_name", "normalization", "eps"))
def mlp_forward(x, w, b, gamma, beta, alpha, *,
                act_name="prelu", normalization=False, eps=1e-5):
    """Pallas equivalent of MLP(in_size, out_size, normalization, act_name)(x)."""
    if act_name not in ("relu", "prelu", "sigmoid"):
        raise ValueError(f"unsupported act_name: {act_name}")

    in_size, out_size = w.shape
    lead_shape = x.shape[:-1]
    x2 = x.reshape(-1, in_size)
    m = x2.shape[0]

    xb = jnp.dtype(x.dtype).itemsize
    wb = jnp.dtype(w.dtype).itemsize
    ob = xb
    f32b = 4

    # Lane-dense output: pad N up to a multiple of 128 (padded W columns /
    # bias are zero; LayerNorm masks them out; result is sliced afterwards).
    n = _round_up(out_size, 128)
    n_pad = n - out_size
    if n_pad:
        w = jnp.pad(w, ((0, 0), (0, n_pad)))
        b = jnp.pad(b, (0, n_pad))
        gamma = jnp.pad(gamma, (0, n_pad))
        beta = jnp.pad(beta, (0, n_pad))

    b2 = b.reshape(1, n)
    g2 = gamma.reshape(1, n)
    bt2 = beta.reshape(1, n)
    a1 = jnp.asarray(alpha, dtype=jnp.float32).reshape((1,))

    # ------------------------------------------------------------------ tiles
    phys_vmem = _vmem_capacity_bytes()
    budget = int(phys_vmem * 0.7)

    min_tm = _min_row_tile(x.dtype)
    tm_cands = [c for c in (1024, 512, 256, 128, 64, 32, 16, 8) if c >= min_tm]

    # Prefer keeping W fully resident in VMEM (DMA'd once, no re-streaming).
    w_resident_bytes = 2 * in_size * n * wb          # conservative: 2 buffers
    use_resident = w_resident_bytes <= int(budget * 0.6)

    if use_resident:
        tk = in_size
        fixed_bytes = w_resident_bytes
        row_bytes = 2 * in_size * xb + 2 * n * ob    # x tile + out tile (x2 buf)
    else:
        tk = next((c for c in (512, 256, 128) if in_size % c == 0), in_size)
        fixed_bytes = 2 * tk * n * wb
        row_bytes = 2 * tk * xb + 2 * n * ob + n * f32b   # + f32 accumulator

    small_fixed = 3 * 2 * n * f32b                   # bias / gamma / beta
    rows_fit = max(min_tm, (budget - fixed_bytes - small_fixed) // max(row_bytes, 1))

    m_ceil = _round_up(m, min_tm)
    tm = next((c for c in tm_cands if c <= rows_fit and c <= m_ceil), min_tm)
    # Keep >= 2 row tiles so both v7x TensorCores get work on the parallel axis.
    while (m_ceil // tm) < 2 and tm > min_tm:
        tm //= 2
    tm = max(tm, min_tm)

    m_pad = _round_up(m, tm)
    if m_pad != m:
        x2 = jnp.pad(x2, ((0, m_pad - m), (0, 0)))

    working_set = fixed_bytes + small_fixed + tm * row_bytes
    vmem_limit = int(min(phys_vmem * 0.9, working_set + (8 << 20)))
    vmem_limit = max(vmem_limit, 16 << 20)

    num_row_tiles = m_pad // tm
    flops = 2 * m_pad * in_size * n
    transcendentals = m_pad * n if act_name == "sigmoid" else 0
    w_passes = 1 if use_resident else num_row_tiles
    bytes_accessed = int(m_pad * in_size * xb + w_passes * in_size * n * wb
                         + m_pad * n * ob + 3 * n * f32b)
    cost = pl.CostEstimate(flops=flops, transcendentals=transcendentals,
                           bytes_accessed=bytes_accessed)

    common = dict(act_name=act_name, use_ln=bool(normalization),
                  eps=float(eps), valid_n=out_size)

    # ------------------------------------------------------------------ call
    if use_resident:
        out2 = pl.pallas_call(
            functools.partial(_mlp_wres_kernel, **common),
            out_shape=jax.ShapeDtypeStruct((m_pad, n), x.dtype),
            grid=(num_row_tiles,),
            in_specs=[
                pl.BlockSpec(memory_space=pltpu.SMEM),              # alpha
                pl.BlockSpec((tm, in_size), lambda i: (i, 0)),      # x tile
                pl.BlockSpec((in_size, n), lambda i: (0, 0)),       # W (resident)
                pl.BlockSpec((1, n), lambda i: (0, 0)),             # linear bias
                pl.BlockSpec((1, n), lambda i: (0, 0)),             # LN weight
                pl.BlockSpec((1, n), lambda i: (0, 0)),             # LN bias
            ],
            out_specs=pl.BlockSpec((tm, n), lambda i: (i, 0)),
            compiler_params=pltpu.CompilerParams(
                dimension_semantics=("parallel",),
                vmem_limit_bytes=vmem_limit),
            cost_estimate=cost,
        )(a1, x2, w, b2, g2, bt2)
    else:
        out2 = pl.pallas_call(
            functools.partial(_mlp_ktiled_kernel, **common),
            out_shape=jax.ShapeDtypeStruct((m_pad, n), x.dtype),
            grid=(num_row_tiles, in_size // tk),
            in_specs=[
                pl.BlockSpec(memory_space=pltpu.SMEM),              # alpha
                pl.BlockSpec((tm, tk), lambda i, k: (i, k)),        # x tile
                pl.BlockSpec((tk, n), lambda i, k: (k, 0)),         # W tile
                pl.BlockSpec((1, n), lambda i, k: (0, 0)),          # linear bias
                pl.BlockSpec((1, n), lambda i, k: (0, 0)),          # LN weight
                pl.BlockSpec((1, n), lambda i, k: (0, 0)),          # LN bias
            ],
            out_specs=pl.BlockSpec((tm, n), lambda i, k: (i, 0)),
            scratch_shapes=[pltpu.VMEM((tm, n), jnp.float32)],
            compiler_params=pltpu.CompilerParams(
                dimension_semantics=("parallel", "arbitrary"),
                vmem_limit_bytes=vmem_limit),
            cost_estimate=cost,
        )(a1, x2, w, b2, g2, bt2)

    # TODO(synk): nn.Dropout with drop_rate > 0 (training-mode RNG) is not
    # implemented in-kernel; the module default drop_rate=0.0 is an identity.
    out2 = out2[:m, :out_size]
    return out2.reshape(lead_shape + (out_size,))


# ----------------------------------------------------------------------------
# self-test
# ----------------------------------------------------------------------------
if __name__ == "__main__":
    key = jax.random.PRNGKey(0)
    kx, kw, kb, kx2 = jax.random.split(key, 4)

    batch, seq, in_size, out_size = 2, 8, 32, 32
    x = jax.random.normal(kx, (batch, seq, in_size), dtype=jnp.float32)
    # nn.Linear-equivalent parameters, stored (in, out) so y = x @ w + b.
    w = jax.random.normal(kw, (in_size, out_size), dtype=jnp.float32) / jnp.sqrt(
        jnp.float32(in_size))
    b = jax.random.normal(kb, (out_size,), dtype=jnp.float32) * 0.1
    gamma = jnp.ones((out_size,), dtype=jnp.float32)    # LayerNorm weight init
    beta = jnp.zeros((out_size,), dtype=jnp.float32)    # LayerNorm bias init
    alpha = jnp.float32(0.25)                           # nn.PReLU() default

    def ref(xin, act_name, normalization):
        y = xin @ w + b
        if normalization:
            u = y.mean(-1, keepdims=True)
            s = ((y - u) ** 2).mean(-1, keepdims=True)
            y = (y - u) / jnp.sqrt(s + 1e-5)
            y = gamma * y + beta
        if act_name == "relu":
            y = jnp.maximum(y, 0.0)
        elif act_name == "prelu":
            y = jnp.where(y > 0, y, 0.25 * y)
        elif act_name == "sigmoid":
            y = jax.nn.sigmoid(y)
        return y

    # Default MLP config: Linear -> PReLU (no norm, no dropout).
    y1 = jax.block_until_ready(
        mlp_forward(x, w, b, gamma, beta, alpha,
                    act_name="prelu", normalization=False))
    assert y1.shape == (batch, seq, out_size) and y1.dtype == x.dtype
    assert jnp.allclose(y1, ref(x, "prelu", False), atol=1e-4), "prelu MLP mismatch"

    # LayerNorm + ReLU variant (exercises masked-LN lane padding path).
    y2 = jax.block_until_ready(
        mlp_forward(x, w, b, gamma, beta, alpha,
                    act_name="relu", normalization=True))
    assert jnp.allclose(y2, ref(x, "relu", True), atol=1e-4), "ln+relu MLP mismatch"

    # Sigmoid variant (exact sigmoid path).
    y3 = jax.block_until_ready(
        mlp_forward(x, w, b, gamma, beta, alpha,
                    act_name="sigmoid", normalization=False))
    assert jnp.allclose(y3, ref(x, "sigmoid", False), atol=1e-4), "sigmoid MLP mismatch"

    # Ragged row count (exercises the row-padding / >=2-row-tile logic).
    x_odd = jax.random.normal(kx2, (3, 5, in_size), dtype=jnp.float32)
    y4 = jax.block_until_ready(
        mlp_forward(x_odd, w, b, gamma, beta, alpha,
                    act_name="prelu", normalization=True))
    assert y4.shape == (3, 5, out_size)
    assert jnp.allclose(y4, ref(x_odd, "prelu", True), atol=1e-4), "ragged-M mismatch"

    print("KERNEL_OK")
</pallas_src>

<mosaic_0001>
module attributes {stable_mosaic.version = 11 : i64} {
  func.func @_mlp_wres_kernel(%arg0: i32, %arg1: memref<1xf32, #tpu.memory_space<smem>>, %arg2: memref<8x32xf32, #tpu.memory_space<vmem>>, %arg3: memref<32x128xf32, #tpu.memory_space<vmem>>, %arg4: memref<1x128xf32, #tpu.memory_space<vmem>>, %arg5: memref<1x128xf32, #tpu.memory_space<vmem>>, %arg6: memref<1x128xf32, #tpu.memory_space<vmem>>, %arg7: memref<8x128xf32, #tpu.memory_space<vmem>>) attributes {dimension_semantics = [#tpu.dimension_semantics<parallel>], iteration_bounds = array<i64: 2>, scalar_prefetch = 0 : i64, scratch_operands = 0 : i64, tpu.core_type = #tpu.core_type<tc>, window_params = [{transform_indices = @transform_0, window_bounds = array<i64: 1>}, {transform_indices = @transform_1, window_bounds = array<i64: 8, 32>}, {pipeline_mode = #tpu.pipeline_mode<synchronous>, transform_indices = @transform_2, window_bounds = array<i64: 32, 128>}, {pipeline_mode = #tpu.pipeline_mode<synchronous>, transform_indices = @transform_3, window_bounds = array<i64: 1, 128>}, {pipeline_mode = #tpu.pipeline_mode<synchronous>, transform_indices = @transform_4, window_bounds = array<i64: 1, 128>}, {pipeline_mode = #tpu.pipeline_mode<synchronous>, transform_indices = @transform_5, window_bounds = array<i64: 1, 128>}, {transform_indices = @transform_6, window_bounds = array<i64: 8, 128>}]} {
    %c0 = arith.constant 0 : index
    %c0_0 = arith.constant 0 : index
    %0 = vector.load %arg2[%c0, %c0_0] : memref<8x32xf32, #tpu.memory_space<vmem>>, vector<8x32xf32>
    %c0_1 = arith.constant 0 : index
    %c0_2 = arith.constant 0 : index
    %1 = vector.load %arg3[%c0_1, %c0_2] : memref<32x128xf32, #tpu.memory_space<vmem>>, vector<32x128xf32>
    %cst = arith.constant dense<0.000000e+00> : vector<8x128xf32>
    %2 = tpu.matmul %0, %1, %cst {dimension_numbers = #tpu.dot_dimension_numbers<[1], [0], [0], [1], [0, 0, 1, 1], [], []>} : vector<8x32xf32>, vector<32x128xf32>, vector<8x128xf32> -> vector<8x128xf32>
    %c0_3 = arith.constant 0 : index
    %3 = memref.load %arg1[%c0_3] : memref<1xf32, #tpu.memory_space<smem>>
    %c0_4 = arith.constant 0 : index
    %c0_5 = arith.constant 0 : index
    %4 = vector.load %arg4[%c0_4, %c0_5] : memref<1x128xf32, #tpu.memory_space<vmem>>, vector<1x128xf32>
    %5 = vector.broadcast %4 : vector<1x128xf32> to vector<8x128xf32>
    %6 = arith.addf %2, %5 : vector<8x128xf32>
    %cst_6 = arith.constant 0.000000e+00 : f32
    %7 = vector.broadcast %cst_6 : f32 to vector<8x128xf32>
    %8 = arith.cmpf ogt, %6, %7 : vector<8x128xf32>
    %9 = vector.broadcast %3 : f32 to vector<8x128xf32>
    %10 = arith.mulf %9, %6 : vector<8x128xf32>
    %11 = arith.select %8, %6, %10 : vector<8x128xi1>, vector<8x128xf32>
    %c0_7 = arith.constant 0 : index
    %c0_8 = arith.constant 0 : index
    %12 = vector.load %arg7[%c0_7, %c0_8] : memref<8x128xf32, #tpu.memory_space<vmem>>, vector<8x128xf32>
    tpu.vector_store %arg7[%c0_7, %c0_8], %11 {strides = array<i32>} : memref<8x128xf32, #tpu.memory_space<vmem>>, vector<8x128xf32>,
    return
  }
  func.func @transform_0(%arg0: i32) -> i32 {
    %c0_i32 = arith.constant 0 : i32
    %c0_i32_0 = arith.constant 0 : i32
    return %c0_i32 : i32
  }
  func.func @transform_1(%arg0: i32) -> (i32, i32) {
    %c0_i32 = arith.constant 0 : i32
    %c0_i32_0 = arith.constant 0 : i32
    return %arg0, %c0_i32 : i32, i32
  }
  func.func @transform_2(%arg0: i32) -> (i32, i32) {
    %c0_i32 = arith.constant 0 : i32
    %c0_i32_0 = arith.constant 0 : i32
    %c0_i32_1 = arith.constant 0 : i32
    return %c0_i32, %c0_i32_0 : i32, i32
  }
  func.func @transform_3(%arg0: i32) -> (i32, i32) {
    %c0_i32 = arith.constant 0 : i32
    %c0_i32_0 = arith.constant 0 : i32
    %c0_i32_1 = arith.constant 0 : i32
    return %c0_i32, %c0_i32_0 : i32, i32
  }
  func.func @transform_4(%arg0: i32) -> (i32, i32) {
    %c0_i32 = arith.constant 0 : i32
    %c0_i32_0 = arith.constant 0 : i32
    %c0_i32_1 = arith.constant 0 : i32
    return %c0_i32, %c0_i32_0 : i32, i32
  }
  func.func @transform_5(%arg0: i32) -> (i32, i32) {
    %c0_i32 = arith.constant 0 : i32
    %c0_i32_0 = arith.constant 0 : i32
    %c0_i32_1 = arith.constant 0 : i32
    return %c0_i32, %c0_i32_0 : i32, i32
  }
  func.func @transform_6(%arg0: i32) -> (i32, i32) {
    %c0_i32 = arith.constant 0 : i32
    %c0_i32_0 = arith.constant 0 : i32
    return %arg0, %c0_i32 : i32, i32
  }
}

</mosaic_0001>

<llo_original>
// kernel: mlp_forward.1
$region0: #{mlp_forward.1}
  #allocation0 [shape = 'u32[]', space=smem, size = 0x4, offset = 0x4, fixed_abs, tag = 'smem constant byte address 0x4 - core index']
  #allocation1 [shape = 'u32[144,128]{1,0:T(1,128)}', space=vmem, size = 0x12000, scoped, tag = 'internal scratch']
  #allocation2 [shape = 'f32[1]{0:T(128)S(6)}', space=smem, size = 0x200, scoped, tag = 'scoped memory for mlp_forward.1']
  %s0 = inlined_call_operand.<no memory space> [shape: f32[1], index: 0, kind: input, shape index: {}]
  %s1 = inlined_call_operand.vmem [shape: f32[16,32], index: 1, kind: input, shape index: {}]
  %s2 = inlined_call_operand.vmem [shape: f32[32,128], index: 2, kind: input, shape index: {}]
  %s3 = inlined_call_operand.vmem [shape: f32[1,128], index: 3, kind: input, shape index: {}]
  %s4 = inlined_call_operand.vmem [shape: f32[1,128], index: 4, kind: input, shape index: {}]
  %s5 = inlined_call_operand.vmem [shape: f32[1,128], index: 5, kind: input, shape index: {}]
  %s6 = inlined_call_operand.vmem [shape: f32[16,128], index: 6, kind: output, shape index: {}]
  %s7 = sld [smem:[#allocation0]]
  $region57: #{mlp_forward.1} parent=0
    _
  %s9 = ssub.s32 1, %s7
  %s10 = scalar_select 0, %s9, %s7
  %11 = sst [smem:[#allocation2]] %s0
  loop: start=0, step=1, limit=4
  $region2: #{mlp_forward.1} parent=0 // loop_pre_header
    _
  $region3: #{mlp_forward.1} parent=0 // loop_header
    %s13 = sphi 0, %s17
    %p14 = scmp.ge.s32.totalorder %s13, 4
    %s21 = sphi 0, %s21
    %s23 = sphi 0, %s21
    %s24 = sphi 0, %s23
    %s38 = sphi 0, %s24
    %s44 = sphi 0, %s46
    %s47 = sphi 0, %s44
    %s48 = sphi 0, %s47
    %s64 = sphi 0, %s48
    %s68 = sphi 0, %s68
    %s70 = sphi 0, %s68
    %s71 = sphi 0, %s70
    %s85 = sphi 0, %s71
    %s89 = sphi 0, %s89
    %s91 = sphi 0, %s89
    %s92 = sphi 0, %s91
    %s106 = sphi 0, %s92
    %s110 = sphi 0, %s110
    %s112 = sphi 0, %s110
    %s113 = sphi 0, %s112
    %s127 = sphi 0, %s113
    %s131 = sphi 0, %s131
    %s133 = sphi 0, %s131
    %s134 = sphi 0, %s133
    %s148 = sphi 0, %s134
    %s154 = sphi 0, %s156
    %s157 = sphi 0, %s154
    %s158 = sphi 0, %s157
    %s174 = sphi 0, %s158
  $region4: #{mlp_forward.1} parent=0 // loop_header_branch
    %16 = sbr.rel (%p14) target = $region8
  $region5: #{mlp_forward.1} parent=0 // loop_body
    %s18 = ssub.s32 %s13, 1
    %s19 = ssub.s32 %s13, 2
    %s20 = sadd.s32 %s13, 1
    %s22 = sadd.s32 %s21, 1
    %p25 = scmp.eq.s32.totalorder %s13, 1
    %p26 = scmp.ne.s32.totalorder %s21, %s23
    %p27 = scmp.eq.s32.totalorder %s13, 0
    %p28 = por %p26, %p27
    %p29 = scmp.ne.s32.totalorder %s21, %s23
    %p30 = scmp.eq.s32.totalorder %s18, 1
    %p31 = por %p29, %p30
    %p32 = scmp.ne.s32.totalorder %s23, %s24
    %p33 = scmp.eq.s32.totalorder %s18, 0
    %p34 = por %p32, %p33
    %p35 = scmp.ne.s32.totalorder %s23, %s24
    %p36 = scmp.eq.s32.totalorder %s19, 1
    %p37 = por %p35, %p36
    %p39 = scmp.ne.s32.totalorder %s24, %s38
    %p40 = scmp.eq.s32.totalorder %s19, 0
    %p41 = por %p39, %p40
    %s42 = ssub.s32 %s13, %s20
    %p43 = scmp.eq.s32.totalorder %s42, 0
    %s45 = sadd.s32 %s44, 1
    %s46 = scalar_select %p43, %s44, %s45
    %p49 = pneg %p43
    %p50 = scmp.eq.s32.totalorder %s13, 1
    %p51 = por %p49, %p50
    %p52 = scmp.ne.s32.totalorder %s44, %s47
    %p53 = scmp.eq.s32.totalorder %s13, 0
    %p54 = por %p52, %p53
    %p55 = scmp.ne.s32.totalorder %s44, %s47
    %p56 = scmp.eq.s32.totalorder %s18, 1
    %p57 = por %p55, %p56
    %p58 = scmp.ne.s32.totalorder %s47, %s48
    %p59 = scmp.eq.s32.totalorder %s18, 0
    %p60 = por %p58, %p59
    %p61 = scmp.ne.s32.totalorder %s47, %s48
    %p62 = scmp.eq.s32.totalorder %s19, 1
    %p63 = por %p61, %p62
    %p65 = scmp.ne.s32.totalorder %s48, %s64
    %p66 = scmp.eq.s32.totalorder %s19, 0
    %p67 = por %p65, %p66
    %s69 = sadd.s32 %s68, 1
    %p72 = scmp.eq.s32.totalorder %s13, 1
    %p73 = scmp.ne.s32.totalorder %s68, %s70
    %p74 = scmp.eq.s32.totalorder %s13, 0
    %p75 = por %p73, %p74
    %p76 = scmp.ne.s32.totalorder %s68, %s70
    %p77 = scmp.eq.s32.totalorder %s18, 1
    %p78 = por %p76, %p77
    %p79 = scmp.ne.s32.totalorder %s70, %s71
    %p80 = scmp.eq.s32.totalorder %s18, 0
    %p81 = por %p79, %p80
    %p82 = scmp.ne.s32.totalorder %s70, %s71
    %p83 = scmp.eq.s32.totalorder %s19, 1
    %p84 = por %p82, %p83
    %p86 = scmp.ne.s32.totalorder %s71, %s85
    %p87 = scmp.eq.s32.totalorder %s19, 0
    %p88 = por %p86, %p87
    %s90 = sadd.s32 %s89, 1
    %p93 = scmp.eq.s32.totalorder %s13, 1
    %p94 = scmp.ne.s32.totalorder %s89, %s91
    %p95 = scmp.eq.s32.totalorder %s13, 0
    %p96 = por %p94, %p95
    %p97 = scmp.ne.s32.totalorder %s89, %s91
    %p98 = scmp.eq.s32.totalorder %s18, 1
    %p99 = por %p97, %p98
    %p100 = scmp.ne.s32.totalorder %s91, %s92
    %p101 = scmp.eq.s32.totalorder %s18, 0
    %p102 = por %p100, %p101
    %p103 = scmp.ne.s32.totalorder %s91, %s92
    %p104 = scmp.eq.s32.totalorder %s19, 1
    %p105 = por %p103, %p104
    %p107 = scmp.ne.s32.totalorder %s92, %s106
    %p108 = scmp.eq.s32.totalorder %s19, 0
    %p109 = por %p107, %p108
    %s111 = sadd.s32 %s110, 1
    %p114 = scmp.eq.s32.totalorder %s13, 1
    %p115 = scmp.ne.s32.totalorder %s110, %s112
    %p116 = scmp.eq.s32.totalorder %s13, 0
    %p117 = por %p115, %p116
    %p118 = scmp.ne.s32.totalorder %s110, %s112
    %p119 = scmp.eq.s32.totalorder %s18, 1
    %p120 = por %p118, %p119
    %p121 = scmp.ne.s32.totalorder %s112, %s113
    %p122 = scmp.eq.s32.totalorder %s18, 0
    %p123 = por %p121, %p122
    %p124 = scmp.ne.s32.totalorder %s112, %s113
    %p125 = scmp.eq.s32.totalorder %s19, 1
    %p126 = por %p124, %p125
    %p128 = scmp.ne.s32.totalorder %s113, %s127
    %p129 = scmp.eq.s32.totalorder %s19, 0
    %p130 = por %p128, %p129
    %s132 = sadd.s32 %s131, 1
    %p135 = scmp.eq.s32.totalorder %s13, 1
    %p136 = scmp.ne.s32.totalorder %s131, %s133
    %p137 = scmp.eq.s32.totalorder %s13, 0
    %p138 = por %p136, %p137
    %p139 = scmp.ne.s32.totalorder %s131, %s133
    %p140 = scmp.eq.s32.totalorder %s18, 1
    %p141 = por %p139, %p140
    %p142 = scmp.ne.s32.totalorder %s133, %s134
    %p143 = scmp.eq.s32.totalorder %s18, 0
    %p144 = por %p142, %p143
    %p145 = scmp.ne.s32.totalorder %s133, %s134
    %p146 = scmp.eq.s32.totalorder %s19, 1
    %p147 = por %p145, %p146
    %p149 = scmp.ne.s32.totalorder %s134, %s148
    %p150 = scmp.eq.s32.totalorder %s19, 0
    %p151 = por %p149, %p150
    %s152 = ssub.s32 %s13, %s20
    %p153 = scmp.eq.s32.totalorder %s152, 0
    %s155 = sadd.s32 %s154, 1
    %s156 = scalar_select %p153, %s154, %s155
    %p159 = pneg %p153
    %p160 = scmp.eq.s32.totalorder %s13, 1
    %p161 = por %p159, %p160
    %p162 = scmp.ne.s32.totalorder %s154, %s157
    %p163 = scmp.eq.s32.totalorder %s13, 0
    %p164 = por %p162, %p163
    %p165 = scmp.ne.s32.totalorder %s154, %s157
    %p166 = scmp.eq.s32.totalorder %s18, 1
    %p167 = por %p165, %p166
    %p168 = scmp.ne.s32.totalorder %s157, %s158
    %p169 = scmp.eq.s32.totalorder %s18, 0
    %p170 = por %p168, %p169
    %p171 = scmp.ne.s32.totalorder %s157, %s158
    %p172 = scmp.eq.s32.totalorder %s19, 1
    %p173 = por %p171, %p172
    %p175 = scmp.ne.s32.totalorder %s158, %s174
    %p176 = scmp.eq.s32.totalorder %s19, 0
    %p177 = por %p175, %p176
    %p178 = scmp.le.s32.totalorder 1, %s13
    %p179 = scmp.lt.s32.totalorder %s13, 3
    %p180 = pnand %p178, %p179
    %p181 = pneg %p180
    // Predicated region
    $region9: #{mlp_forward.1} parent=5 // pred_check
      _
    $region10: #{mlp_forward.1} parent=5 // pred_check_branch
      %183 = sbr.rel (%p180) target = $region12
    $region11: #{mlp_forward.1} parent=5 // pred_region
      %s184 = ssub.s32 %s13, 1
      // Predicated region
      $region13: #{mlp_forward.1} parent=11 // pred_check
        %p185 = pneg %p34
      $region14: #{mlp_forward.1} parent=11 // pred_check_branch
        %187 = sbr.rel (%p185) target = $region16
      $region15: #{mlp_forward.1} parent=11 // pred_region
        _
      $region16: #{mlp_forward.1} parent=11 // pred_fallthru
        _
      // Predicated region
      $region17: #{mlp_forward.1} parent=11 // pred_check
        %p188 = pneg %p81
      $region18: #{mlp_forward.1} parent=11 // pred_check_branch
        %190 = sbr.rel (%p188) target = $region20
      $region19: #{mlp_forward.1} parent=11 // pred_region
        _
      $region20: #{mlp_forward.1} parent=11 // pred_fallthru
        _
      // Predicated region
      $region21: #{mlp_forward.1} parent=11 // pred_check
        %p191 = pneg %p102
      $region22: #{mlp_forward.1} parent=11 // pred_check_branch
        %193 = sbr.rel (%p191) target = $region24
      $region23: #{mlp_forward.1} parent=11 // pred_region
        _
      $region24: #{mlp_forward.1} parent=11 // pred_fallthru
        _
      // Predicated region
      $region25: #{mlp_forward.1} parent=11 // pred_check
        %p194 = pneg %p123
      $region26: #{mlp_forward.1} parent=11 // pred_check_branch
        %196 = sbr.rel (%p194) target = $region28
      $region27: #{mlp_forward.1} parent=11 // pred_region
        _
      $region28: #{mlp_forward.1} parent=11 // pred_fallthru
        _
      // Predicated region
      $region29: #{mlp_forward.1} parent=11 // pred_check
        %p197 = pneg %p144
      $region30: #{mlp_forward.1} parent=11 // pred_check_branch
        %199 = sbr.rel (%p197) target = $region32
      $region31: #{mlp_forward.1} parent=11 // pred_region
        _
      $region32: #{mlp_forward.1} parent=11 // pred_fallthru
        _
    $region12: #{mlp_forward.1} parent=5 // pred_fallthru
      _
    %p200 = scmp.lt.s32.totalorder %s13, 2
    // Predicated region
    $region33: #{mlp_forward.1} parent=5 // pred_check
      %p201 = pneg %p200
    $region34: #{mlp_forward.1} parent=5 // pred_check_branch
      %203 = sbr.rel (%p201) target = $region36
    $region35: #{mlp_forward.1} parent=5 // pred_region
      // Predicated region
      $region37: #{mlp_forward.1} parent=35 // pred_check
        %p204 = pneg %p54
      $region38: #{mlp_forward.1} parent=35 // pred_check_branch
        %206 = sbr.rel (%p204) target = $region40
      $region39: #{mlp_forward.1} parent=35 // pred_region
        %p207 = scmp.lt.s32.totalorder %s13, 1
        %s208 = scalar_select %p207, %s13, 1
        %s209 = smul.addr %s208, 8
        %s210 = scalar_lea.vmem %s1, %s209
      $region40: #{mlp_forward.1} parent=35 // pred_fallthru
        _
    $region36: #{mlp_forward.1} parent=5 // pred_fallthru
      _
    %p211 = scmp.le.s32.totalorder 1, %s13
    %p212 = scmp.lt.s32.totalorder %s13, 3
    %p213 = pnand %p211, %p212
    %p214 = pneg %p213
    // Predicated region
    $region41: #{mlp_forward.1} parent=5 // pred_check
      _
    $region42: #{mlp_forward.1} parent=5 // pred_check_branch
      %216 = sbr.rel (%p213) target = $region44
    $region43: #{mlp_forward.1} parent=5 // pred_region
      %s217 = ssub.s32 %s13, 1
      %p218 = pneg %p34
      %p219 = pneg %p31
      %p220 = scmp.lt.s32.totalorder %s18, 1
      %s221 = scalar_select %p220, %s18, 1
      %s222 = smul.addr %s221, 8
      %s223 = scalar_lea.vmem %s1, %s222
      %p224 = pneg %p60
      %p225 = pneg %p57
      %p226 = pneg %p81
      %p227 = pneg %p78
      %p228 = pneg %p102
      %p229 = pneg %p99
      %p230 = pneg %p123
      %p231 = pneg %p120
      %p232 = pneg %p144
      %p233 = pneg %p141
      %p234 = pneg %p170
      %p235 = pneg %p167
      %p236 = scmp.lt.s32.totalorder %s18, 1
      %s237 = scalar_select %p236, %s18, 1
      %s238 = smul.addr %s237, 8
      %s239 = scalar_lea.vmem %s6, %s238
      %p240 = scmp.lt.s32.totalorder %s18, 1
      %s241 = scalar_select %p240, %s18, 1
      %s242 = smul.addr %s241, 8
      %s243 = scalar_lea.vmem %s1, %s242
      %p244 = scmp.lt.s32.totalorder %s18, 1
      %s245 = scalar_select %p244, %s18, 1
      %s246 = smul.addr %s245, 8
      %s247 = scalar_lea.vmem %s6, %s246
      %v248 = vld [vmem:[%s243] sm:$0xff]
      %v249 = vld [vmem:[%s2] sm:$0xff]
      %v250 = vld [vmem:[%s2 + $0x8] sm:$0xff]
      %v251 = vld [vmem:[%s2 + $0x10] sm:$0xff]
      %v252 = vld [vmem:[%s2 + $0x18] sm:$0xff]
      %s253 = sld [smem:[#allocation2]]
      %v254 = vld [vmem:[%s3] sm:$0x1]
      %v256 = vlaneseq
      %v257 = vshrl.u32 %v256, 7
      %v258 = vsub.s32 0, %v257
      %v259 = vrot.slane %v254, %v258
      %vm261 = vcmask 261120
      %v263 = vsel %vm261, %v248, 0
      %265 = vmatprep.subr.mxu0 0.0
      %266 = vmatpush1.msra.mxu0 0.0
      %267 = vmatprep.subr.mxu0 0.0
      %268 = vmatpush1.msra.mxu0 0.0
      %269 = vmatprep.subr.mxu0 0.0
      %270 = vmatpush1.msra.mxu0 0.0
      %271 = vmatprep.subr.mxu0 0.0
      %272 = vmatpush1.msra.mxu0 0.0
      %273 = vmatprep.subr.mxu0 0.0
      %274 = vmatpush1.msra.mxu0 0.0
      %275 = vmatprep.subr.mxu0 0.0
      %276 = vmatpush1.msra.mxu0 0.0
      %277 = vmatprep.subr.mxu0 0.0
      %278 = vmatpush1.msra.mxu0 0.0
      %279 = vmatprep.subr.mxu0 0.0
      %280 = vmatpush1.msra.mxu0 0.0
      %281 = vmatprep.subr.mxu0 0.0
      %282 = vmatpush1.msra.mxu0 0.0
      %283 = vmatprep.subr.mxu0 0.0
      %284 = vmatpush1.msra.mxu0 0.0
      %285 = vmatprep.subr.mxu0 0.0
      %286 = vmatpush1.msra.mxu0 0.0
      %287 = vmatprep.subr.mxu0 0.0
      %288 = vmatpush1.msra.mxu0 0.0
      %289 = vmatprep.subr.mxu0 0.0
      %290 = vmatpush1.msra.mxu0 %v252
      %291 = vmatprep.subr.mxu0 0.0
      %292 = vmatpush1.msra.mxu0 %v251
      %293 = vmatprep.subr.mxu0 0.0
      %294 = vmatpush1.msra.mxu0 %v250
      %295 = vmatprep.subr.mxu0 0.0
      %296 = vmatpush1.msra.mxu0 %v249
      %297 = vmatprep.subr.mxu0 0.0
      %298 = vmatpush2.msra.mxu0 0.0
      %299 = vmatprep.subr.mxu0 0.0
      %300 = vmatpush2.msra.mxu0 0.0
      %301 = vmatprep.subr.mxu0 0.0
      %302 = vmatpush2.msra.mxu0 0.0
      %303 = vmatprep.subr.mxu0 0.0
      %304 = vmatpush2.msra.mxu0 0.0
      %305 = vmatprep.subr.mxu0 0.0
      %306 = vmatpush2.msra.mxu0 0.0
      %307 = vmatprep.subr.mxu0 0.0
      %308 = vmatpush2.msra.mxu0 0.0
      %309 = vmatprep.subr.mxu0 0.0
      %310 = vmatpush2.msra.mxu0 0.0
      %311 = vmatprep.subr.mxu0 0.0
      %312 = vmatpush2.msra.mxu0 0.0
      %313 = vmatprep.subr.mxu0 0.0
      %314 = vmatpush2.msra.mxu0 0.0
      %315 = vmatprep.subr.mxu0 0.0
      %316 = vmatpush2.msra.mxu0 0.0
      %317 = vmatprep.subr.mxu0 0.0
      %318 = vmatpush2.msra.mxu0 0.0
      %319 = vmatprep.subr.mxu0 0.0
      %320 = vmatpush2.msra.mxu0 0.0
      %321 = vmatprep.subr.mxu0 0.0
      %322 = vmatpush2.msra.mxu0 0.0
      %323 = vmatprep.subr.mxu0 0.0
      %324 = vmatpush2.msra.mxu0 0.0
      %325 = vmatprep.subr.mxu0 0.0
      %326 = vmatpush2.msra.mxu0 0.0
      %327 = vmatprep.subr.mxu0 0.0
      %328 = vmatpush2.msra.mxu0 0.0
      %329 = vmatprep.mubr.f32.mxu0 0.0
      %330 = vmatmul.mubr.f32.gmra.mxu0 %v263
      %v331 = vpop.f32.mrf.mxu0
      %v332 = vadd.f32 %v259, %v331
      %v333 = vpop.f32.mrf.mxu0
      %334 = vdwg.mxu0
      %vm335 = vcmp.gt.f32.partialorder %v332, 0.0
      %v336 = vstv %s253
      %v337 = vmul.f32 %v336, %v332
      %v338 = vsel %vm335, %v332, %v337
      %339 = vst [vmem:[%s247] sm:$0xff] %v338
      %p340 = scmp.lt.s32.totalorder %s18, 1
      %s341 = scalar_select %p340, %s18, 1
      %s342 = smul.addr %s341, 8
      %s343 = scalar_lea.vmem %s6, %s342
      // Predicated region
      $region45: #{mlp_forward.1} parent=43 // pred_check
        %p344 = pneg %p167
      $region46: #{mlp_forward.1} parent=43 // pred_check_branch
        %346 = sbr.rel (%p344) target = $region48
      $region47: #{mlp_forward.1} parent=43 // pred_region
        _
      $region48: #{mlp_forward.1} parent=43 // pred_fallthru
        _
    $region44: #{mlp_forward.1} parent=5 // pred_fallthru
      _
    %p347 = scmp.le.s32.totalorder 2, %s13
    // Predicated region
    $region49: #{mlp_forward.1} parent=5 // pred_check
      %p348 = pneg %p347
    $region50: #{mlp_forward.1} parent=5 // pred_check_branch
      %350 = sbr.rel (%p348) target = $region52
    $region51: #{mlp_forward.1} parent=5 // pred_region
      %s351 = ssub.s32 %s13, 2
      // Predicated region
      $region53: #{mlp_forward.1} parent=51 // pred_check
        %p352 = pneg %p173
      $region54: #{mlp_forward.1} parent=51 // pred_check_branch
        %354 = sbr.rel (%p352) target = $region56
      $region55: #{mlp_forward.1} parent=51 // pred_region
        %p355 = scmp.lt.s32.totalorder %s19, 1
        %s356 = scalar_select %p355, %s19, 1
        %s357 = smul.addr %s356, 8
        %s358 = scalar_lea.vmem %s6, %s357
      $region56: #{mlp_forward.1} parent=51 // pred_fallthru
        _
    $region52: #{mlp_forward.1} parent=5 // pred_fallthru
      _
  $region6: #{mlp_forward.1} parent=0 // loop_footer
    %s17 = sadd.s32 1, %s13
  $region7: #{mlp_forward.1} parent=0 // loop_footer_branch
    %12 = sbr.rel target = $region3
  $region8: #{mlp_forward.1} parent=0 // loop_exit
    _

</llo_original>
